<compile_context>
chip_gen: v5e
topology: v5e:2x2
jax: 0.10.0
libtpu: 0.0.40
codegen_flags: <defaults>
</compile_context>

<pallas_src>
import functools

import jax
import jax.numpy as jnp
from jax import lax
from jax.experimental import pallas as pl
from jax.experimental.pallas import tpu as pltpu


def _round_up(v: int, m: int) -> int:
    return (v + m - 1) // m * m


def _knn_topk_kernel(q_ref, keys_ref, out_ref, *, k: int):
    """One query-row tile: biased scores vs all keys on the MXU, iterative top-k."""
    q = q_ref[...]        # (TM, Dp) f32, column d holds the constant 1 (bias)
    keys = keys_ref[...]  # (Dp, N)  f32, row d holds -0.5*||x_j||^2

    # score[i, j] = <x_i, x_j> - 0.5*||x_j||^2   (per-row ranking == -dist)
    scores = lax.dot_general(
        q, keys,
        dimension_numbers=(((1,), (0,)), ((), ())),   # plain (TM,Dp)x(Dp,N) matmul
        preferred_element_type=jnp.float32,
    )                                                 # (TM, N)

    tm, n = scores.shape
    col_ids = lax.broadcasted_iota(jnp.int32, (1, n), 1)   # broadcast over sublanes
    neg_inf = jnp.float32(-jnp.inf)

    # k is small & static -> unrolled.
    for kk in range(k):
        m = jnp.max(scores, axis=-1, keepdims=True)                   # (TM, 1)
        # lowest column index among the per-row maxima (lowest index wins ties)
        idx = jnp.min(jnp.where(scores == m, col_ids, n),
                      axis=-1, keepdims=True)                         # (TM, 1) int32
        out_ref[:, kk:kk + 1] = idx                                   # 1-lane store
        scores = jnp.where(col_ids == idx, neg_inf, scores)           # per-row knockout


def dense_dilated_knn_graph(x: jax.Array, k: int, *, row_tile: int = 128) -> jax.Array:
    """x: (n_points, n_dims) float -> edge_idx: (2, n_points, k) int32.

    Matches DenseDilatedKnnGraph.forward (torch returns int64; int32 is used here).
    """
    n, d = x.shape
    if k > n:
        raise ValueError(f"k={k} must be <= n_points={n}")

    x = x.astype(jnp.float32)

    # ---- F.normalize(x, p=2, dim=0): per-feature-column L2 normalize (wrapper) ----
    col_norm = jnp.sqrt(jnp.sum(x * x, axis=0, keepdims=True))            # (1, D)
    xn = x / jnp.maximum(col_norm, 1e-12)

    # ---- row tiling: >= 2 tiles when possible (v7x megacore), sublane aligned ----
    tm = max(8, min(row_tile, _round_up(-(-n // 2), 8)))
    n_pad = _round_up(n, tm)
    kpad = max(128, _round_up(k, 128))                 # lane-dense output width
    dp = _round_up(d + 1, 8)                           # feature dim + bias column

    # ---- augmented operands: bias folded into the matmul ----
    # q_aug[:, :d] = xn, q_aug[:, d] = 1 ; keys_aug[:d, :] = xn^T,
    # keys_aug[d, :] = -0.5*||x_j||^2 ; remaining rows/cols are zero padding.
    q_aug = jnp.zeros((n_pad, dp), jnp.float32)
    q_aug = q_aug.at[:n, :d].set(xn)
    q_aug = q_aug.at[:n, d].set(1.0)
    keys_aug = jnp.zeros((dp, n), jnp.float32)
    keys_aug = keys_aug.at[:d, :].set(xn.T)
    keys_aug = keys_aug.at[d, :].set(-0.5 * jnp.sum(xn * xn, axis=-1))

    grid = (n_pad // tm,)
    nn_padded = pl.pallas_call(
        functools.partial(_knn_topk_kernel, k=k),
        out_shape=jax.ShapeDtypeStruct((n_pad, kpad), jnp.int32),
        grid_spec=pltpu.PrefetchScalarGridSpec(
            num_scalar_prefetch=0,
            grid=grid,
            in_specs=[
                pl.BlockSpec((tm, dp), lambda i: (i, 0)),   # query row tile (pipelined)
                pl.BlockSpec((dp, n), lambda i: (0, 0)),    # lane-dense keys, resident
            ],
            out_specs=pl.BlockSpec((tm, kpad), lambda i: (i, 0)),
        ),
        compiler_params=pltpu.CompilerParams(
            dimension_semantics=("parallel",),              # shard row tiles across cores
        ),
    )(q_aug, keys_aug)

    nn_idx = nn_padded[:n, :k]                                            # (N, k)
    center_idx = jnp.broadcast_to(jnp.arange(n, dtype=jnp.int32)[:, None], (n, k))
    return jnp.stack((nn_idx, center_idx), axis=0)                        # (2, N, k)


if __name__ == "__main__":
    key = jax.random.PRNGKey(0)
    n_points, n_dims, k = 64, 16, 8
    x = jax.random.normal(key, (n_points, n_dims), dtype=jnp.float32)

    edge_idx = dense_dilated_knn_graph(x, k)
    edge_idx = jax.block_until_ready(edge_idx)

    # ---- structural checks ----
    assert edge_idx.shape == (2, n_points, k)
    assert edge_idx.dtype == jnp.int32
    # center row i must be all i; the self-edge (dist 0) must be the first neighbor.
    assert bool(jnp.all(edge_idx[1] == jnp.arange(n_points)[:, None]))
    assert bool(jnp.all(edge_idx[0, :, 0] == jnp.arange(n_points)))
    assert bool(jnp.all((edge_idx[0] >= 0) & (edge_idx[0] < n_points)))

    # ---- value check against a pure-JAX reference (distance values of chosen edges) ----
    col_norm = jnp.sqrt(jnp.sum(x * x, axis=0, keepdims=True))
    xn = x / jnp.maximum(col_norm, 1e-12)
    sq = jnp.sum(xn * xn, axis=-1, keepdims=True)
    dist = sq - 2.0 * (xn @ xn.T) + sq.T
    ref_vals, _ = lax.top_k(-dist, k)                                     # descending -dist
    got_vals = jnp.take_along_axis(-dist, edge_idx[0], axis=-1)
    assert bool(jnp.allclose(got_vals, ref_vals, atol=1e-5)), "neighbor distances mismatch"

    print("KERNEL_OK")
</pallas_src>

<mosaic_0001>
module attributes {stable_mosaic.version = 11 : i64} {
  func.func @_knn_topk_kernel(%arg0: i32, %arg1: memref<32x24xf32, #tpu.memory_space<vmem>>, %arg2: memref<24x64xf32, #tpu.memory_space<vmem>>, %arg3: memref<32x128xi32, #tpu.memory_space<vmem>>) attributes {dimension_semantics = [#tpu.dimension_semantics<parallel>], iteration_bounds = array<i64: 2>, scalar_prefetch = 0 : i64, scratch_operands = 0 : i64, tpu.core_type = #tpu.core_type<tc>, window_params = [{transform_indices = @transform_0, window_bounds = array<i64: 32, 24>}, {pipeline_mode = #tpu.pipeline_mode<synchronous>, transform_indices = @transform_1, window_bounds = array<i64: 24, 64>}, {transform_indices = @transform_2, window_bounds = array<i64: 32, 128>}]} {
    %c0 = arith.constant 0 : index
    %c0_0 = arith.constant 0 : index
    %0 = vector.load %arg1[%c0, %c0_0] : memref<32x24xf32, #tpu.memory_space<vmem>>, vector<32x24xf32>
    %c0_1 = arith.constant 0 : index
    %c0_2 = arith.constant 0 : index
    %1 = vector.load %arg2[%c0_1, %c0_2] : memref<24x64xf32, #tpu.memory_space<vmem>>, vector<24x64xf32>
    %cst = arith.constant dense<0.000000e+00> : vector<32x64xf32>
    %2 = tpu.matmul %0, %1, %cst {dimension_numbers = #tpu.dot_dimension_numbers<[1], [0], [0], [1], [0, 0, 1, 1], [], []>} : vector<32x24xf32>, vector<24x64xf32>, vector<32x64xf32> -> vector<32x64xf32>
    %3 = tpu.iota {dimensions = array<i32: 1>} : vector<1x64xi32>
    %cst_3 = arith.constant dense<0xFF800000> : vector<32xf32>
    %4 = vector.multi_reduction <maximumf>, %2, %cst_3 [1] : vector<32x64xf32> to vector<32xf32>
    %5 = vector.shape_cast %4 : vector<32xf32> to vector<32x1xf32>
    %6 = vector.broadcast %5 : vector<32x1xf32> to vector<32x64xf32>
    %7 = arith.cmpf oeq, %2, %6 : vector<32x64xf32>
    %c64_i32 = arith.constant 64 : i32
    %8 = vector.shape_cast %3 : vector<1x64xi32> to vector<1x64xi32>
    %9 = vector.broadcast %8 : vector<1x64xi32> to vector<32x64xi32>
    %10 = vector.broadcast %c64_i32 : i32 to vector<32x64xi32>
    %11 = arith.select %7, %9, %10 : vector<32x64xi1>, vector<32x64xi32>
    %cst_4 = arith.constant dense<2147483647> : vector<32xi32>
    %12 = vector.multi_reduction <minsi>, %11, %cst_4 [1] : vector<32x64xi32> to vector<32xi32>
    %13 = vector.shape_cast %12 : vector<32xi32> to vector<32x1xi32>
    %c0_5 = arith.constant 0 : index
    %c0_6 = arith.constant 0 : index
    %14 = vector.load %arg3[%c0_5, %c0_6] : memref<32x128xi32, #tpu.memory_space<vmem>>, vector<32x1xi32>
    tpu.vector_store %arg3[%c0_5, %c0_6], %13 {strides = array<i32>} : memref<32x128xi32, #tpu.memory_space<vmem>>, vector<32x1xi32>,
    %15 = vector.broadcast %3 : vector<1x64xi32> to vector<32x64xi32>
    %16 = vector.broadcast %13 : vector<32x1xi32> to vector<32x64xi32>
    %17 = arith.cmpi eq, %15, %16 : vector<32x64xi32>
    %cst_7 = arith.constant 0xFF800000 : f32
    %18 = vector.broadcast %cst_7 : f32 to vector<32x64xf32>
    %19 = arith.select %17, %18, %2 : vector<32x64xi1>, vector<32x64xf32>
    %cst_8 = arith.constant dense<0xFF800000> : vector<32xf32>
    %20 = vector.multi_reduction <maximumf>, %19, %cst_8 [1] : vector<32x64xf32> to vector<32xf32>
    %21 = vector.shape_cast %20 : vector<32xf32> to vector<32x1xf32>
    %22 = vector.broadcast %21 : vector<32x1xf32> to vector<32x64xf32>
    %23 = arith.cmpf oeq, %19, %22 : vector<32x64xf32>
    %c64_i32_9 = arith.constant 64 : i32
    %24 = vector.shape_cast %3 : vector<1x64xi32> to vector<1x64xi32>
    %25 = vector.broadcast %24 : vector<1x64xi32> to vector<32x64xi32>
    %26 = vector.broadcast %c64_i32_9 : i32 to vector<32x64xi32>
    %27 = arith.select %23, %25, %26 : vector<32x64xi1>, vector<32x64xi32>
    %cst_10 = arith.constant dense<2147483647> : vector<32xi32>
    %28 = vector.multi_reduction <minsi>, %27, %cst_10 [1] : vector<32x64xi32> to vector<32xi32>
    %29 = vector.shape_cast %28 : vector<32xi32> to vector<32x1xi32>
    %c0_11 = arith.constant 0 : index
    %c1 = arith.constant 1 : index
    %30 = vector.load %arg3[%c0_11, %c1] : memref<32x128xi32, #tpu.memory_space<vmem>>, vector<32x1xi32>
    tpu.vector_store %arg3[%c0_11, %c1], %29 {strides = array<i32>} : memref<32x128xi32, #tpu.memory_space<vmem>>, vector<32x1xi32>,
    %31 = vector.broadcast %3 : vector<1x64xi32> to vector<32x64xi32>
    %32 = vector.broadcast %29 : vector<32x1xi32> to vector<32x64xi32>
    %33 = arith.cmpi eq, %31, %32 : vector<32x64xi32>
    %cst_12 = arith.constant 0xFF800000 : f32
    %34 = vector.broadcast %cst_12 : f32 to vector<32x64xf32>
    %35 = arith.select %33, %34, %19 : vector<32x64xi1>, vector<32x64xf32>
    %cst_13 = arith.constant dense<0xFF800000> : vector<32xf32>
    %36 = vector.multi_reduction <maximumf>, %35, %cst_13 [1] : vector<32x64xf32> to vector<32xf32>
    %37 = vector.shape_cast %36 : vector<32xf32> to vector<32x1xf32>
    %38 = vector.broadcast %37 : vector<32x1xf32> to vector<32x64xf32>
    %39 = arith.cmpf oeq, %35, %38 : vector<32x64xf32>
    %c64_i32_14 = arith.constant 64 : i32
    %40 = vector.shape_cast %3 : vector<1x64xi32> to vector<1x64xi32>
    %41 = vector.broadcast %40 : vector<1x64xi32> to vector<32x64xi32>
    %42 = vector.broadcast %c64_i32_14 : i32 to vector<32x64xi32>
    %43 = arith.select %39, %41, %42 : vector<32x64xi1>, vector<32x64xi32>
    %cst_15 = arith.constant dense<2147483647> : vector<32xi32>
    %44 = vector.multi_reduction <minsi>, %43, %cst_15 [1] : vector<32x64xi32> to vector<32xi32>
    %45 = vector.shape_cast %44 : vector<32xi32> to vector<32x1xi32>
    %c0_16 = arith.constant 0 : index
    %c2 = arith.constant 2 : index
    %46 = vector.load %arg3[%c0_16, %c2] : memref<32x128xi32, #tpu.memory_space<vmem>>, vector<32x1xi32>
    tpu.vector_store %arg3[%c0_16, %c2], %45 {strides = array<i32>} : memref<32x128xi32, #tpu.memory_space<vmem>>, vector<32x1xi32>,
    %47 = vector.broadcast %3 : vector<1x64xi32> to vector<32x64xi32>
    %48 = vector.broadcast %45 : vector<32x1xi32> to vector<32x64xi32>
    %49 = arith.cmpi eq, %47, %48 : vector<32x64xi32>
    %cst_17 = arith.constant 0xFF800000 : f32
    %50 = vector.broadcast %cst_17 : f32 to vector<32x64xf32>
    %51 = arith.select %49, %50, %35 : vector<32x64xi1>, vector<32x64xf32>
    %cst_18 = arith.constant dense<0xFF800000> : vector<32xf32>
    %52 = vector.multi_reduction <maximumf>, %51, %cst_18 [1] : vector<32x64xf32> to vector<32xf32>
    %53 = vector.shape_cast %52 : vector<32xf32> to vector<32x1xf32>
    %54 = vector.broadcast %53 : vector<32x1xf32> to vector<32x64xf32>
    %55 = arith.cmpf oeq, %51, %54 : vector<32x64xf32>
    %c64_i32_19 = arith.constant 64 : i32
    %56 = vector.shape_cast %3 : vector<1x64xi32> to vector<1x64xi32>
    %57 = vector.broadcast %56 : vector<1x64xi32> to vector<32x64xi32>
    %58 = vector.broadcast %c64_i32_19 : i32 to vector<32x64xi32>
    %59 = arith.select %55, %57, %58 : vector<32x64xi1>, vector<32x64xi32>
    %cst_20 = arith.constant dense<2147483647> : vector<32xi32>
    %60 = vector.multi_reduction <minsi>, %59, %cst_20 [1] : vector<32x64xi32> to vector<32xi32>
    %61 = vector.shape_cast %60 : vector<32xi32> to vector<32x1xi32>
    %c0_21 = arith.constant 0 : index
    %c3 = arith.constant 3 : index
    %62 = vector.load %arg3[%c0_21, %c3] : memref<32x128xi32, #tpu.memory_space<vmem>>, vector<32x1xi32>
    tpu.vector_store %arg3[%c0_21, %c3], %61 {strides = array<i32>} : memref<32x128xi32, #tpu.memory_space<vmem>>, vector<32x1xi32>,
    %63 = vector.broadcast %3 : vector<1x64xi32> to vector<32x64xi32>
    %64 = vector.broadcast %61 : vector<32x1xi32> to vector<32x64xi32>
    %65 = arith.cmpi eq, %63, %64 : vector<32x64xi32>
    %cst_22 = arith.constant 0xFF800000 : f32
    %66 = vector.broadcast %cst_22 : f32 to vector<32x64xf32>
    %67 = arith.select %65, %66, %51 : vector<32x64xi1>, vector<32x64xf32>
    %cst_23 = arith.constant dense<0xFF800000> : vector<32xf32>
    %68 = vector.multi_reduction <maximumf>, %67, %cst_23 [1] : vector<32x64xf32> to vector<32xf32>
    %69 = vector.shape_cast %68 : vector<32xf32> to vector<32x1xf32>
    %70 = vector.broadcast %69 : vector<32x1xf32> to vector<32x64xf32>
    %71 = arith.cmpf oeq, %67, %70 : vector<32x64xf32>
    %c64_i32_24 = arith.constant 64 : i32
    %72 = vector.shape_cast %3 : vector<1x64xi32> to vector<1x64xi32>
    %73 = vector.broadcast %72 : vector<1x64xi32> to vector<32x64xi32>
    %74 = vector.broadcast %c64_i32_24 : i32 to vector<32x64xi32>
    %75 = arith.select %71, %73, %74 : vector<32x64xi1>, vector<32x64xi32>
    %cst_25 = arith.constant dense<2147483647> : vector<32xi32>
    %76 = vector.multi_reduction <minsi>, %75, %cst_25 [1] : vector<32x64xi32> to vector<32xi32>
    %77 = vector.shape_cast %76 : vector<32xi32> to vector<32x1xi32>
    %c0_26 = arith.constant 0 : index
    %c4 = arith.constant 4 : index
    %78 = vector.load %arg3[%c0_26, %c4] : memref<32x128xi32, #tpu.memory_space<vmem>>, vector<32x1xi32>
    tpu.vector_store %arg3[%c0_26, %c4], %77 {strides = array<i32>} : memref<32x128xi32, #tpu.memory_space<vmem>>, vector<32x1xi32>,
    %79 = vector.broadcast %3 : vector<1x64xi32> to vector<32x64xi32>
    %80 = vector.broadcast %77 : vector<32x1xi32> to vector<32x64xi32>
    %81 = arith.cmpi eq, %79, %80 : vector<32x64xi32>
    %cst_27 = arith.constant 0xFF800000 : f32
    %82 = vector.broadcast %cst_27 : f32 to vector<32x64xf32>
    %83 = arith.select %81, %82, %67 : vector<32x64xi1>, vector<32x64xf32>
    %cst_28 = arith.constant dense<0xFF800000> : vector<32xf32>
    %84 = vector.multi_reduction <maximumf>, %83, %cst_28 [1] : vector<32x64xf32> to vector<32xf32>
    %85 = vector.shape_cast %84 : vector<32xf32> to vector<32x1xf32>
    %86 = vector.broadcast %85 : vector<32x1xf32> to vector<32x64xf32>
    %87 = arith.cmpf oeq, %83, %86 : vector<32x64xf32>
    %c64_i32_29 = arith.constant 64 : i32
    %88 = vector.shape_cast %3 : vector<1x64xi32> to vector<1x64xi32>
    %89 = vector.broadcast %88 : vector<1x64xi32> to vector<32x64xi32>
    %90 = vector.broadcast %c64_i32_29 : i32 to vector<32x64xi32>
    %91 = arith.select %87, %89, %90 : vector<32x64xi1>, vector<32x64xi32>
    %cst_30 = arith.constant dense<2147483647> : vector<32xi32>
    %92 = vector.multi_reduction <minsi>, %91, %cst_30 [1] : vector<32x64xi32> to vector<32xi32>
    %93 = vector.shape_cast %92 : vector<32xi32> to vector<32x1xi32>
    %c0_31 = arith.constant 0 : index
    %c5 = arith.constant 5 : index
    %94 = vector.load %arg3[%c0_31, %c5] : memref<32x128xi32, #tpu.memory_space<vmem>>, vector<32x1xi32>
    tpu.vector_store %arg3[%c0_31, %c5], %93 {strides = array<i32>} : memref<32x128xi32, #tpu.memory_space<vmem>>, vector<32x1xi32>,
    %95 = vector.broadcast %3 : vector<1x64xi32> to vector<32x64xi32>
    %96 = vector.broadcast %93 : vector<32x1xi32> to vector<32x64xi32>
    %97 = arith.cmpi eq, %95, %96 : vector<32x64xi32>
    %cst_32 = arith.constant 0xFF800000 : f32
    %98 = vector.broadcast %cst_32 : f32 to vector<32x64xf32>
    %99 = arith.select %97, %98, %83 : vector<32x64xi1>, vector<32x64xf32>
    %cst_33 = arith.constant dense<0xFF800000> : vector<32xf32>
    %100 = vector.multi_reduction <maximumf>, %99, %cst_33 [1] : vector<32x64xf32> to vector<32xf32>
    %101 = vector.shape_cast %100 : vector<32xf32> to vector<32x1xf32>
    %102 = vector.broadcast %101 : vector<32x1xf32> to vector<32x64xf32>
    %103 = arith.cmpf oeq, %99, %102 : vector<32x64xf32>
    %c64_i32_34 = arith.constant 64 : i32
    %104 = vector.shape_cast %3 : vector<1x64xi32> to vector<1x64xi32>
    %105 = vector.broadcast %104 : vector<1x64xi32> to vector<32x64xi32>
    %106 = vector.broadcast %c64_i32_34 : i32 to vector<32x64xi32>
    %107 = arith.select %103, %105, %106 : vector<32x64xi1>, vector<32x64xi32>
    %cst_35 = arith.constant dense<2147483647> : vector<32xi32>
    %108 = vector.multi_reduction <minsi>, %107, %cst_35 [1] : vector<32x64xi32> to vector<32xi32>
    %109 = vector.shape_cast %108 : vector<32xi32> to vector<32x1xi32>
    %c0_36 = arith.constant 0 : index
    %c6 = arith.constant 6 : index
    %110 = vector.load %arg3[%c0_36, %c6] : memref<32x128xi32, #tpu.memory_space<vmem>>, vector<32x1xi32>
    tpu.vector_store %arg3[%c0_36, %c6], %109 {strides = array<i32>} : memref<32x128xi32, #tpu.memory_space<vmem>>, vector<32x1xi32>,
    %111 = vector.broadcast %3 : vector<1x64xi32> to vector<32x64xi32>
    %112 = vector.broadcast %109 : vector<32x1xi32> to vector<32x64xi32>
    %113 = arith.cmpi eq, %111, %112 : vector<32x64xi32>
    %cst_37 = arith.constant 0xFF800000 : f32
    %114 = vector.broadcast %cst_37 : f32 to vector<32x64xf32>
    %115 = arith.select %113, %114, %99 : vector<32x64xi1>, vector<32x64xf32>
    %cst_38 = arith.constant dense<0xFF800000> : vector<32xf32>
    %116 = vector.multi_reduction <maximumf>, %115, %cst_38 [1] : vector<32x64xf32> to vector<32xf32>
    %117 = vector.shape_cast %116 : vector<32xf32> to vector<32x1xf32>
    %118 = vector.broadcast %117 : vector<32x1xf32> to vector<32x64xf32>
    %119 = arith.cmpf oeq, %115, %118 : vector<32x64xf32>
    %c64_i32_39 = arith.constant 64 : i32
    %120 = vector.shape_cast %3 : vector<1x64xi32> to vector<1x64xi32>
    %121 = vector.broadcast %120 : vector<1x64xi32> to vector<32x64xi32>
    %122 = vector.broadcast %c64_i32_39 : i32 to vector<32x64xi32>
    %123 = arith.select %119, %121, %122 : vector<32x64xi1>, vector<32x64xi32>
    %cst_40 = arith.constant dense<2147483647> : vector<32xi32>
    %124 = vector.multi_reduction <minsi>, %123, %cst_40 [1] : vector<32x64xi32> to vector<32xi32>
    %125 = vector.shape_cast %124 : vector<32xi32> to vector<32x1xi32>
    %c0_41 = arith.constant 0 : index
    %c7 = arith.constant 7 : index
    %126 = vector.load %arg3[%c0_41, %c7] : memref<32x128xi32, #tpu.memory_space<vmem>>, vector<32x1xi32>
    tpu.vector_store %arg3[%c0_41, %c7], %125 {strides = array<i32>} : memref<32x128xi32, #tpu.memory_space<vmem>>, vector<32x1xi32>,
    return
  }
  func.func @transform_0(%arg0: i32) -> (i32, i32) {
    %c0_i32 = arith.constant 0 : i32
    %c0_i32_0 = arith.constant 0 : i32
    return %arg0, %c0_i32 : i32, i32
  }
  func.func @transform_1(%arg0: i32) -> (i32, i32) {
    %c0_i32 = arith.constant 0 : i32
    %c0_i32_0 = arith.constant 0 : i32
    %c0_i32_1 = arith.constant 0 : i32
    return %c0_i32, %c0_i32_0 : i32, i32
  }
  func.func @transform_2(%arg0: i32) -> (i32, i32) {
    %c0_i32 = arith.constant 0 : i32
    %c0_i32_0 = arith.constant 0 : i32
    return %arg0, %c0_i32 : i32, i32
  }
}

</mosaic_0001>

<llo_original>
// kernel: tpu_custom_call.1
$region0: #{tpu_custom_call.1}
  #allocation0 [shape = 'u32[]', space=smem, size = 0x4, offset = 0x4, fixed_abs, tag = 'smem constant byte address 0x4 - core index']
  #allocation1 [shape = 'u32[72,128]{1,0:T(1,128)}', space=vmem, size = 0x9000, scoped, tag = 'internal scratch']
  %s0 = inlined_call_operand.vmem [shape: f32[64,24], index: 0, kind: input, shape index: {}]
  %s1 = inlined_call_operand.vmem [shape: f32[24,64], index: 1, kind: input, shape index: {}]
  %s2 = inlined_call_operand.hbm [shape: s32[64,128], index: 2, kind: output, shape index: {}]
  %s3 = sld [smem:[#allocation0]]
  $region41: #{tpu_custom_call.1} parent=0
    _
  %s5 = ssub.s32 1, %s3
  %s6 = scalar_select 0, %s5, %s3
  $region1: #{tpu_custom_call.1} parent=0
    #allocation2 [shape = 'u8[32768]{0}', space=vmem, size = 0x8000, scoped, tag = 'output window, operand 0']
    #allocation3 [shape = 's32[2]{0}', space=sflag, size = 0x8, scoped, tag = 'scoped memory for tpu_custom_call.1']
    %7 = vsyncpa [#allocation3], 0
    %s8 = scalar_lea.sflag [#allocation3], 1
    %9 = vsyncpa %s8, 0
    loop: start=0, step=1, limit=4
    $region2: #{tpu_custom_call.1} parent=1 // loop_pre_header
      _
    $region3: #{tpu_custom_call.1} parent=1 // loop_header
      %s11 = sphi 0, %s15
      %p12 = scmp.ge.s32.totalorder %s11, 4
      %s21 = sphi 0, %s23
      %s24 = sphi 0, %s21
      %s25 = sphi 0, %s24
      %s41 = sphi 0, %s25
      %s45 = sphi 0, %s45
      %s47 = sphi 0, %s45
      %s48 = sphi 0, %s47
      %s62 = sphi 0, %s48
      %s68 = sphi 0, %s70
      %s71 = sphi 0, %s68
      %s72 = sphi 0, %s71
      %s88 = sphi 0, %s72
    $region4: #{tpu_custom_call.1} parent=1 // loop_header_branch
      %14 = sbr.rel (%p12) target = $region8
    $region5: #{tpu_custom_call.1} parent=1 // loop_body
      %s16 = ssub.s32 %s11, 1
      %s17 = ssub.s32 %s11, 2
      %s18 = sadd.s32 %s11, 1
      %s19 = ssub.s32 %s11, %s18
      %p20 = scmp.eq.s32.totalorder %s19, 0
      %s22 = sadd.s32 %s21, 1
      %s23 = scalar_select %p20, %s21, %s22
      %p26 = pneg %p20
      %p27 = scmp.eq.s32.totalorder %s11, 1
      %p28 = por %p26, %p27
      %p29 = scmp.ne.s32.totalorder %s21, %s24
      %p30 = scmp.eq.s32.totalorder %s11, 0
      %p31 = por %p29, %p30
      %p32 = scmp.ne.s32.totalorder %s21, %s24
      %p33 = scmp.eq.s32.totalorder %s16, 1
      %p34 = por %p32, %p33
      %p35 = scmp.ne.s32.totalorder %s24, %s25
      %p36 = scmp.eq.s32.totalorder %s16, 0
      %p37 = por %p35, %p36
      %p38 = scmp.ne.s32.totalorder %s24, %s25
      %p39 = scmp.eq.s32.totalorder %s17, 1
      %p40 = por %p38, %p39
      %p42 = scmp.ne.s32.totalorder %s25, %s41
      %p43 = scmp.eq.s32.totalorder %s17, 0
      %p44 = por %p42, %p43
      %s46 = sadd.s32 %s45, 1
      %p49 = scmp.eq.s32.totalorder %s11, 1
      %p50 = scmp.ne.s32.totalorder %s45, %s47
      %p51 = scmp.eq.s32.totalorder %s11, 0
      %p52 = por %p50, %p51
      %p53 = scmp.ne.s32.totalorder %s45, %s47
      %p54 = scmp.eq.s32.totalorder %s16, 1
      %p55 = por %p53, %p54
      %p56 = scmp.ne.s32.totalorder %s47, %s48
      %p57 = scmp.eq.s32.totalorder %s16, 0
      %p58 = por %p56, %p57
      %p59 = scmp.ne.s32.totalorder %s47, %s48
      %p60 = scmp.eq.s32.totalorder %s17, 1
      %p61 = por %p59, %p60
      %p63 = scmp.ne.s32.totalorder %s48, %s62
      %p64 = scmp.eq.s32.totalorder %s17, 0
      %p65 = por %p63, %p64
      %s66 = ssub.s32 %s11, %s18
      %p67 = scmp.eq.s32.totalorder %s66, 0
      %s69 = sadd.s32 %s68, 1
      %s70 = scalar_select %p67, %s68, %s69
      %p73 = pneg %p67
      %p74 = scmp.eq.s32.totalorder %s11, 1
      %p75 = por %p73, %p74
      %p76 = scmp.ne.s32.totalorder %s68, %s71
      %p77 = scmp.eq.s32.totalorder %s11, 0
      %p78 = por %p76, %p77
      %p79 = scmp.ne.s32.totalorder %s68, %s71
      %p80 = scmp.eq.s32.totalorder %s16, 1
      %p81 = por %p79, %p80
      %p82 = scmp.ne.s32.totalorder %s71, %s72
      %p83 = scmp.eq.s32.totalorder %s16, 0
      %p84 = por %p82, %p83
      %p85 = scmp.ne.s32.totalorder %s71, %s72
      %p86 = scmp.eq.s32.totalorder %s17, 1
      %p87 = por %p85, %p86
      %p89 = scmp.ne.s32.totalorder %s72, %s88
      %p90 = scmp.eq.s32.totalorder %s17, 0
      %p91 = por %p89, %p90
      %p92 = scmp.le.s32.totalorder 1, %s11
      %p93 = scmp.lt.s32.totalorder %s11, 3
      %p94 = pnand %p92, %p93
      %p95 = pneg %p94
      // Predicated region
      $region9: #{tpu_custom_call.1} parent=5 // pred_check
        _
      $region10: #{tpu_custom_call.1} parent=5 // pred_check_branch
        %97 = sbr.rel (%p94) target = $region12
      $region11: #{tpu_custom_call.1} parent=5 // pred_region
        %s98 = ssub.s32 %s11, 1
        // Predicated region
        $region13: #{tpu_custom_call.1} parent=11 // pred_check
          %p99 = pneg %p58
        $region14: #{tpu_custom_call.1} parent=11 // pred_check_branch
          %101 = sbr.rel (%p99) target = $region16
        $region15: #{tpu_custom_call.1} parent=11 // pred_region
          _
        $region16: #{tpu_custom_call.1} parent=11 // pred_fallthru
          _
      $region12: #{tpu_custom_call.1} parent=5 // pred_fallthru
        _
      %p102 = scmp.lt.s32.totalorder %s11, 2
      // Predicated region
      $region17: #{tpu_custom_call.1} parent=5 // pred_check
        %p103 = pneg %p102
      $region18: #{tpu_custom_call.1} parent=5 // pred_check_branch
        %105 = sbr.rel (%p103) target = $region20
      $region19: #{tpu_custom_call.1} parent=5 // pred_region
        // Predicated region
        $region21: #{tpu_custom_call.1} parent=19 // pred_check
          %p106 = pneg %p31
        $region22: #{tpu_custom_call.1} parent=19 // pred_check_branch
          %108 = sbr.rel (%p106) target = $region24
        $region23: #{tpu_custom_call.1} parent=19 // pred_region
          %s109 = smul.u32 4, %s11
          %p110 = scmp.lt.s32.totalorder %s109, 7
          %s111 = scalar_select %p110, %s109, 7
          %s112 = smul.addr %s111, 8
          %s113 = scalar_lea.vmem %s0, %s112
          %s114 = smul.u32 4, %s11
        $region24: #{tpu_custom_call.1} parent=19 // pred_fallthru
          _
      $region20: #{tpu_custom_call.1} parent=5 // pred_fallthru
        _
      %p115 = scmp.le.s32.totalorder 1, %s11
      %p116 = scmp.lt.s32.totalorder %s11, 3
      %p117 = pnand %p115, %p116
      %p118 = pneg %p117
      // Predicated region
      $region25: #{tpu_custom_call.1} parent=5 // pred_check
        _
      $region26: #{tpu_custom_call.1} parent=5 // pred_check_branch
        %120 = sbr.rel (%p117) target = $region28
      $region27: #{tpu_custom_call.1} parent=5 // pred_region
        %s121 = ssub.s32 %s11, 1
        %s122 = smul.u32 4, %s16
        %p123 = scmp.lt.s32.totalorder %s122, 7
        %s124 = scalar_select %p123, %s122, 7
        %s125 = smul.addr %s124, 8
        %s126 = scalar_lea.vmem %s0, %s125
        %p127 = pneg %p37
        %p128 = pneg %p34
        %p129 = pneg %p58
        %p130 = pneg %p55
        %p131 = pneg %p84
        %p132 = pneg %p81
        %s133 = sand.u32 %s71, 1
        %s134 = scalar_lea.sflag [#allocation3], %s133
        %s135 = sand.u32 %s71, 1
        %s136 = smul.addr %s135, 32
        %s137 = scalar_lea.vmem [#allocation2], %s136
        %s138 = smul.u32 4, %s16
        %p139 = scmp.lt.s32.totalorder %s138, 7
        %s140 = scalar_select %p139, %s138, 7
        %s141 = smul.addr %s140, 8
        %s142 = scalar_lea.vmem %s0, %s141
        %s143 = smul.u32 4, %s16
        %s144 = smul.u32 4, %s16
        %v145 = vld [vmem:[%s142] sm:$0xff]
        %v146 = vld [vmem:[%s142 + $0x8] sm:$0xff]
        %v147 = vld [vmem:[%s142 + $0x10] sm:$0xff]
        %v148 = vld [vmem:[%s142 + $0x18] sm:$0xff]
        %v149 = vld [vmem:[%s1] sm:$0xff]
        %v150 = vld [vmem:[%s1 + $0x8] sm:$0xff]
        %v151 = vld [vmem:[%s1 + $0x10] sm:$0xff]
        %vm152 = vcmask 195584
        %v154 = vsel %vm152, %v145, 0
        %v157 = vsel %vm152, %v146, 0
        %v160 = vsel %vm152, %v147, 0
        %v163 = vsel %vm152, %v148, 0
        %165 = vmatpush.msra.mxu0 0.0
        %166 = vmatpush.msra.mxu0 0.0
        %167 = vmatpush.msra.mxu0 0.0
        %168 = vmatpush.msra.mxu0 0.0
        %169 = vmatpush.msra.mxu0 0.0
        %170 = vmatpush.msra.mxu0 0.0
        %171 = vmatpush.msra.mxu0 0.0
        %172 = vmatpush.msra.mxu0 0.0
        %173 = vmatpush.msra.mxu0 0.0
        %174 = vmatpush.msra.mxu0 0.0
        %175 = vmatpush.msra.mxu0 0.0
        %176 = vmatpush.msra.mxu0 0.0
        %177 = vmatpush.msra.mxu0 0.0
        %178 = vmatpush.msra.mxu0 %v151
        %179 = vmatpush.msra.mxu0 %v150
        %180 = vmatpush.msra.mxu0 %v149
        %181 = vmatmul.f32.gmra.mxu0 %v154
        %v182 = vpop.f32.mrf.mxu0
        %v183 = vadd.f32 0.0, %v182
        %184 = vmatmul.f32.gmra.mxu0 %v157
        %v185 = vpop.f32.mrf.mxu0
        %v186 = vadd.f32 0.0, %v185
        %187 = vmatmul.f32.gmra.mxu0 %v160
        %v188 = vpop.f32.mrf.mxu0
        %v189 = vadd.f32 0.0, %v188
        %190 = vmatmul.f32.gmra.mxu0 %v163
        %v191 = vpop.f32.mrf.mxu0
        %v192 = vadd.f32 0.0, %v191
        %193 = vdwg.mxu0
        %v194 = vlaneseq
        %v195 = vand.u32 %v194, 127
        %vm196 = vcmask 523264
        %v197 = vsel %vm196, %v183, -inf
        %198 = vmax.xlane.f32.xlu0 %v197
        %v199 = vpop.xlane.xlu0 %198
        %v200 = vsel %vm196, %v186, -inf
        %201 = vmax.xlane.f32.xlu0 %v200
        %v202 = vpop.xlane.xlu0 %201
        %v203 = vsel %vm196, %v189, -inf
        %204 = vmax.xlane.f32.xlu0 %v203
        %v205 = vpop.xlane.xlu0 %204
        %v206 = vsel %vm196, %v192, -inf
        %207 = vmax.xlane.f32.xlu0 %v206
        %v208 = vpop.xlane.xlu0 %207
        %vm209 = vcmp.eq.f32.partialorder %v183, %v199
        %vm210 = vcmp.eq.f32.partialorder %v186, %v202
        %vm211 = vcmp.eq.f32.partialorder %v189, %v205
        %vm212 = vcmp.eq.f32.partialorder %v192, %v208
        %v213 = vsel %vm209, %v195, 64
        %v214 = vsel %vm210, %v195, 64
        %v215 = vsel %vm211, %v195, 64
        %v216 = vsel %vm212, %v195, 64
        %v217 = vsel %vm196, %v213, 2147483647
        %v218 = vand.u32 %v217, 65535
        %v219 = vshra.s32 %v217, 16
        %v220 = vcvt.s32.f32 %v218
        %v221 = vcvt.s32.f32 %v219
        %222 = vmin.xlane.f32.xlu0 %v221
        %v223 = vpop.xlane.xlu0 %222
        %vm224 = vcmp.eq.f32.partialorder %v221, %v223
        %v225 = vsel %vm224, %v220, inf
        %226 = vmin.xlane.f32.xlu0 %v225
        %v227 = vpop.xlane.xlu0 %226
        %v228 = vcvt.f32.s32 %v227
        %v229 = vcvt.f32.s32 %v223
        %v230 = vshll.u32 %v229, 16
        %v231 = vadd.s32 %v230, %v228
        %v232 = vsel %vm196, %v214, 2147483647
        %v233 = vand.u32 %v232, 65535
        %v234 = vshra.s32 %v232, 16
        %v235 = vcvt.s32.f32 %v233
        %v236 = vcvt.s32.f32 %v234
        %237 = vmin.xlane.f32.xlu0 %v236
        %v238 = vpop.xlane.xlu0 %237
        %vm239 = vcmp.eq.f32.partialorder %v236, %v238
        %v240 = vsel %vm239, %v235, inf
        %241 = vmin.xlane.f32.xlu0 %v240
        %v242 = vpop.xlane.xlu0 %241
        %v243 = vcvt.f32.s32 %v242
        %v244 = vcvt.f32.s32 %v238
        %v245 = vshll.u32 %v244, 16
        %v246 = vadd.s32 %v245, %v243
        %v247 = vsel %vm196, %v215, 2147483647
        %v248 = vand.u32 %v247, 65535
        %v249 = vshra.s32 %v247, 16
        %v250 = vcvt.s32.f32 %v248
        %v251 = vcvt.s32.f32 %v249
        %252 = vmin.xlane.f32.xlu0 %v251
        %v253 = vpop.xlane.xlu0 %252
        %vm254 = vcmp.eq.f32.partialorder %v251, %v253
        %v255 = vsel %vm254, %v250, inf
        %256 = vmin.xlane.f32.xlu0 %v255
        %v257 = vpop.xlane.xlu0 %256
        %v258 = vcvt.f32.s32 %v257
        %v259 = vcvt.f32.s32 %v253
        %v260 = vshll.u32 %v259, 16
        %v261 = vadd.s32 %v260, %v258
        %v262 = vsel %vm196, %v216, 2147483647
        %v263 = vand.u32 %v262, 65535
        %v264 = vshra.s32 %v262, 16
        %v265 = vcvt.s32.f32 %v263
        %v266 = vcvt.s32.f32 %v264
        %267 = vmin.xlane.f32.xlu0 %v266
        %v268 = vpop.xlane.xlu0 %267
        %vm269 = vcmp.eq.f32.partialorder %v266, %v268
        %v270 = vsel %vm269, %v265, inf
        %271 = vmin.xlane.f32.xlu0 %v270
        %v272 = vpop.xlane.xlu0 %271
        %v273 = vcvt.f32.s32 %v272
        %v274 = vcvt.f32.s32 %v268
        %v275 = vshll.u32 %v274, 16
        %v276 = vadd.s32 %v275, %v273
        %vm277 = vcmask 7168
        %278 = vst.msk [vmem:[%s137] sm:$0xff] %vm277, %v231
        %279 = vst.msk [vmem:[%s137 + $0x8] sm:$0xff] %vm277, %v246
        %280 = vst.msk [vmem:[%s137 + $0x10] sm:$0xff] %vm277, %v261
        %281 = vst.msk [vmem:[%s137 + $0x18] sm:$0xff] %vm277, %v276
        %vm282 = vcmp.eq.s32.totalorder %v195, %v231
        %vm283 = vcmp.eq.s32.totalorder %v195, %v246
        %vm284 = vcmp.eq.s32.totalorder %v195, %v261
        %vm285 = vcmp.eq.s32.totalorder %v195, %v276
        %v286 = vsel %vm282, -inf, %v183
        %v287 = vsel %vm283, -inf, %v186
        %v288 = vsel %vm284, -inf, %v189
        %v289 = vsel %vm285, -inf, %v192
        %v290 = vsel %vm196, %v286, -inf
        %291 = vmax.xlane.f32.xlu0 %v290
        %v292 = vpop.xlane.xlu0 %291
        %v293 = vsel %vm196, %v287, -inf
        %294 = vmax.xlane.f32.xlu0 %v293
        %v295 = vpop.xlane.xlu0 %294
        %v296 = vsel %vm196, %v288, -inf
        %297 = vmax.xlane.f32.xlu0 %v296
        %v298 = vpop.xlane.xlu0 %297
        %v299 = vsel %vm196, %v289, -inf
        %300 = vmax.xlane.f32.xlu0 %v299
        %v301 = vpop.xlane.xlu0 %300
        %vm302 = vcmp.eq.f32.partialorder %v286, %v292
        %vm303 = vcmp.eq.f32.partialorder %v287, %v295
        %vm304 = vcmp.eq.f32.partialorder %v288, %v298
        %vm305 = vcmp.eq.f32.partialorder %v289, %v301
        %v306 = vsel %vm302, %v195, 64
        %v307 = vsel %vm303, %v195, 64
        %v308 = vsel %vm304, %v195, 64
        %v309 = vsel %vm305, %v195, 64
        %v310 = vsel %vm196, %v306, 2147483647
        %v311 = vand.u32 %v310, 65535
        %v312 = vshra.s32 %v310, 16
        %v313 = vcvt.s32.f32 %v311
        %v314 = vcvt.s32.f32 %v312
        %315 = vmin.xlane.f32.xlu0 %v314
        %v316 = vpop.xlane.xlu0 %315
        %vm317 = vcmp.eq.f32.partialorder %v314, %v316
        %v318 = vsel %vm317, %v313, inf
        %319 = vmin.xlane.f32.xlu0 %v318
        %v320 = vpop.xlane.xlu0 %319
        %v321 = vcvt.f32.s32 %v320
        %v322 = vcvt.f32.s32 %v316
        %v323 = vshll.u32 %v322, 16
        %v324 = vadd.s32 %v323, %v321
        %v325 = vsel %vm196, %v307, 2147483647
        %v326 = vand.u32 %v325, 65535
        %v327 = vshra.s32 %v325, 16
        %v328 = vcvt.s32.f32 %v326
        %v329 = vcvt.s32.f32 %v327
        %330 = vmin.xlane.f32.xlu0 %v329
        %v331 = vpop.xlane.xlu0 %330
        %vm332 = vcmp.eq.f32.partialorder %v329, %v331
        %v333 = vsel %vm332, %v328, inf
        %334 = vmin.xlane.f32.xlu0 %v333
        %v335 = vpop.xlane.xlu0 %334
        %v336 = vcvt.f32.s32 %v335
        %v337 = vcvt.f32.s32 %v331
        %v338 = vshll.u32 %v337, 16
        %v339 = vadd.s32 %v338, %v336
        %v340 = vsel %vm196, %v308, 2147483647
        %v341 = vand.u32 %v340, 65535
        %v342 = vshra.s32 %v340, 16
        %v343 = vcvt.s32.f32 %v341
        %v344 = vcvt.s32.f32 %v342
        %345 = vmin.xlane.f32.xlu0 %v344
        %v346 = vpop.xlane.xlu0 %345
        %vm347 = vcmp.eq.f32.partialorder %v344, %v346
        %v348 = vsel %vm347, %v343, inf
        %349 = vmin.xlane.f32.xlu0 %v348
        %v350 = vpop.xlane.xlu0 %349
        %v351 = vcvt.f32.s32 %v350
        %v352 = vcvt.f32.s32 %v346
        %v353 = vshll.u32 %v352, 16
        %v354 = vadd.s32 %v353, %v351
        %v355 = vsel %vm196, %v309, 2147483647
        %v356 = vand.u32 %v355, 65535
        %v357 = vshra.s32 %v355, 16
        %v358 = vcvt.s32.f32 %v356
        %v359 = vcvt.s32.f32 %v357
        %360 = vmin.xlane.f32.xlu0 %v359
        %v361 = vpop.xlane.xlu0 %360
        %vm362 = vcmp.eq.f32.partialorder %v359, %v361
        %v363 = vsel %vm362, %v358, inf
        %364 = vmin.xlane.f32.xlu0 %v363
        %v365 = vpop.xlane.xlu0 %364
        %v366 = vcvt.f32.s32 %v365
        %v367 = vcvt.f32.s32 %v361
        %v368 = vshll.u32 %v367, 16
        %v369 = vadd.s32 %v368, %v366
        %vm370 = vcmask 15368
        %371 = vst.msk [vmem:[%s137] sm:$0xff] %vm370, %v324
        %372 = vst.msk [vmem:[%s137 + $0x8] sm:$0xff] %vm370, %v339
        %373 = vst.msk [vmem:[%s137 + $0x10] sm:$0xff] %vm370, %v354
        %374 = vst.msk [vmem:[%s137 + $0x18] sm:$0xff] %vm370, %v369
        %vm375 = vcmp.eq.s32.totalorder %v195, %v324
        %vm376 = vcmp.eq.s32.totalorder %v195, %v339
        %vm377 = vcmp.eq.s32.totalorder %v195, %v354
        %vm378 = vcmp.eq.s32.totalorder %v195, %v369
        %v379 = vsel %vm375, -inf, %v286
        %v380 = vsel %vm376, -inf, %v287
        %v381 = vsel %vm377, -inf, %v288
        %v382 = vsel %vm378, -inf, %v289
        %v383 = vsel %vm196, %v379, -inf
        %384 = vmax.xlane.f32.xlu0 %v383
        %v385 = vpop.xlane.xlu0 %384
        %v386 = vsel %vm196, %v380, -inf
        %387 = vmax.xlane.f32.xlu0 %v386
        %v388 = vpop.xlane.xlu0 %387
        %v389 = vsel %vm196, %v381, -inf
        %390 = vmax.xlane.f32.xlu0 %v389
        %v391 = vpop.xlane.xlu0 %390
        %v392 = vsel %vm196, %v382, -inf
        %393 = vmax.xlane.f32.xlu0 %v392
        %v394 = vpop.xlane.xlu0 %393
        %vm395 = vcmp.eq.f32.partialorder %v379, %v385
        %vm396 = vcmp.eq.f32.partialorder %v380, %v388
        %vm397 = vcmp.eq.f32.partialorder %v381, %v391
        %vm398 = vcmp.eq.f32.partialorder %v382, %v394
        %v399 = vsel %vm395, %v195, 64
        %v400 = vsel %vm396, %v195, 64
        %v401 = vsel %vm397, %v195, 64
        %v402 = vsel %vm398, %v195, 64
        %v403 = vsel %vm196, %v399, 2147483647
        %v404 = vand.u32 %v403, 65535
        %v405 = vshra.s32 %v403, 16
        %v406 = vcvt.s32.f32 %v404
        %v407 = vcvt.s32.f32 %v405
        %408 = vmin.xlane.f32.xlu0 %v407
        %v409 = vpop.xlane.xlu0 %408
        %vm410 = vcmp.eq.f32.partialorder %v407, %v409
        %v411 = vsel %vm410, %v406, inf
        %412 = vmin.xlane.f32.xlu0 %v411
        %v413 = vpop.xlane.xlu0 %412
        %v414 = vcvt.f32.s32 %v413
        %v415 = vcvt.f32.s32 %v409
        %v416 = vshll.u32 %v415, 16
        %v417 = vadd.s32 %v416, %v414
        %v418 = vsel %vm196, %v400, 2147483647
        %v419 = vand.u32 %v418, 65535
        %v420 = vshra.s32 %v418, 16
        %v421 = vcvt.s32.f32 %v419
        %v422 = vcvt.s32.f32 %v420
        %423 = vmin.xlane.f32.xlu0 %v422
        %v424 = vpop.xlane.xlu0 %423
        %vm425 = vcmp.eq.f32.partialorder %v422, %v424
        %v426 = vsel %vm425, %v421, inf
        %427 = vmin.xlane.f32.xlu0 %v426
        %v428 = vpop.xlane.xlu0 %427
        %v429 = vcvt.f32.s32 %v428
        %v430 = vcvt.f32.s32 %v424
        %v431 = vshll.u32 %v430, 16
        %v432 = vadd.s32 %v431, %v429
        %v433 = vsel %vm196, %v401, 2147483647
        %v434 = vand.u32 %v433, 65535
        %v435 = vshra.s32 %v433, 16
        %v436 = vcvt.s32.f32 %v434
        %v437 = vcvt.s32.f32 %v435
        %438 = vmin.xlane.f32.xlu0 %v437
        %v439 = vpop.xlane.xlu0 %438
        %vm440 = vcmp.eq.f32.partialorder %v437, %v439
        %v441 = vsel %vm440, %v436, inf
        %442 = vmin.xlane.f32.xlu0 %v441
        %v443 = vpop.xlane.xlu0 %442
        %v444 = vcvt.f32.s32 %v443
        %v445 = vcvt.f32.s32 %v439
        %v446 = vshll.u32 %v445, 16
        %v447 = vadd.s32 %v446, %v444
        %v448 = vsel %vm196, %v402, 2147483647
        %v449 = vand.u32 %v448, 65535
        %v450 = vshra.s32 %v448, 16
        %v451 = vcvt.s32.f32 %v449
        %v452 = vcvt.s32.f32 %v450
        %453 = vmin.xlane.f32.xlu0 %v452
        %v454 = vpop.xlane.xlu0 %453
        %vm455 = vcmp.eq.f32.partialorder %v452, %v454
        %v456 = vsel %vm455, %v451, inf
        %457 = vmin.xlane.f32.xlu0 %v456
        %v458 = vpop.xlane.xlu0 %457
        %v459 = vcvt.f32.s32 %v458
        %v460 = vcvt.f32.s32 %v454
        %v461 = vshll.u32 %v460, 16
        %v462 = vadd.s32 %v461, %v459
        %vm463 = vcmask 23568
        %464 = vst.msk [vmem:[%s137] sm:$0xff] %vm463, %v417
        %465 = vst.msk [vmem:[%s137 + $0x8] sm:$0xff] %vm463, %v432
        %466 = vst.msk [vmem:[%s137 + $0x10] sm:$0xff] %vm463, %v447
        %467 = vst.msk [vmem:[%s137 + $0x18] sm:$0xff] %vm463, %v462
        %vm468 = vcmp.eq.s32.totalorder %v195, %v417
        %vm469 = vcmp.eq.s32.totalorder %v195, %v432
        %vm470 = vcmp.eq.s32.totalorder %v195, %v447
        %vm471 = vcmp.eq.s32.totalorder %v195, %v462
        %v472 = vsel %vm468, -inf, %v379
        %v473 = vsel %vm469, -inf, %v380
        %v474 = vsel %vm470, -inf, %v381
        %v475 = vsel %vm471, -inf, %v382
        %v476 = vsel %vm196, %v472, -inf
        %477 = vmax.xlane.f32.xlu0 %v476
        %v478 = vpop.xlane.xlu0 %477
        %v479 = vsel %vm196, %v473, -inf
        %480 = vmax.xlane.f32.xlu0 %v479
        %v481 = vpop.xlane.xlu0 %480
        %v482 = vsel %vm196, %v474, -inf
        %483 = vmax.xlane.f32.xlu0 %v482
        %v484 = vpop.xlane.xlu0 %483
        %v485 = vsel %vm196, %v475, -inf
        %486 = vmax.xlane.f32.xlu0 %v485
        %v487 = vpop.xlane.xlu0 %486
        %vm488 = vcmp.eq.f32.partialorder %v472, %v478
        %vm489 = vcmp.eq.f32.partialorder %v473, %v481
        %vm490 = vcmp.eq.f32.partialorder %v474, %v484
        %vm491 = vcmp.eq.f32.partialorder %v475, %v487
        %v492 = vsel %vm488, %v195, 64
        %v493 = vsel %vm489, %v195, 64
        %v494 = vsel %vm490, %v195, 64
        %v495 = vsel %vm491, %v195, 64
        %v496 = vsel %vm196, %v492, 2147483647
        %v497 = vand.u32 %v496, 65535
        %v498 = vshra.s32 %v496, 16
        %v499 = vcvt.s32.f32 %v497
        %v500 = vcvt.s32.f32 %v498
        %501 = vmin.xlane.f32.xlu0 %v500
        %v502 = vpop.xlane.xlu0 %501
        %vm503 = vcmp.eq.f32.partialorder %v500, %v502
        %v504 = vsel %vm503, %v499, inf
        %505 = vmin.xlane.f32.xlu0 %v504
        %v506 = vpop.xlane.xlu0 %505
        %v507 = vcvt.f32.s32 %v506
        %v508 = vcvt.f32.s32 %v502
        %v509 = vshll.u32 %v508, 16
        %v510 = vadd.s32 %v509, %v507
        %v511 = vsel %vm196, %v493, 2147483647
        %v512 = vand.u32 %v511, 65535
        %v513 = vshra.s32 %v511, 16
        %v514 = vcvt.s32.f32 %v512
        %v515 = vcvt.s32.f32 %v513
        %516 = vmin.xlane.f32.xlu0 %v515
        %v517 = vpop.xlane.xlu0 %516
        %vm518 = vcmp.eq.f32.partialorder %v515, %v517
        %v519 = vsel %vm518, %v514, inf
        %520 = vmin.xlane.f32.xlu0 %v519
        %v521 = vpop.xlane.xlu0 %520
        %v522 = vcvt.f32.s32 %v521
        %v523 = vcvt.f32.s32 %v517
        %v524 = vshll.u32 %v523, 16
        %v525 = vadd.s32 %v524, %v522
        %v526 = vsel %vm196, %v494, 2147483647
        %v527 = vand.u32 %v526, 65535
        %v528 = vshra.s32 %v526, 16
        %v529 = vcvt.s32.f32 %v527
        %v530 = vcvt.s32.f32 %v528
        %531 = vmin.xlane.f32.xlu0 %v530
        %v532 = vpop.xlane.xlu0 %531
        %vm533 = vcmp.eq.f32.partialorder %v530, %v532
        %v534 = vsel %vm533, %v529, inf
        %535 = vmin.xlane.f32.xlu0 %v534
        %v536 = vpop.xlane.xlu0 %535
        %v537 = vcvt.f32.s32 %v536
        %v538 = vcvt.f32.s32 %v532
        %v539 = vshll.u32 %v538, 16
        %v540 = vadd.s32 %v539, %v537
        %v541 = vsel %vm196, %v495, 2147483647
        %v542 = vand.u32 %v541, 65535
        %v543 = vshra.s32 %v541, 16
        %v544 = vcvt.s32.f32 %v542
        %v545 = vcvt.s32.f32 %v543
        %546 = vmin.xlane.f32.xlu0 %v545
        %v547 = vpop.xlane.xlu0 %546
        %vm548 = vcmp.eq.f32.partialorder %v545, %v547
        %v549 = vsel %vm548, %v544, inf
        %550 = vmin.xlane.f32.xlu0 %v549
        %v551 = vpop.xlane.xlu0 %550
        %v552 = vcvt.f32.s32 %v551
        %v553 = vcvt.f32.s32 %v547
        %v554 = vshll.u32 %v553, 16
        %v555 = vadd.s32 %v554, %v552
        %vm556 = vcmask 31768
        %557 = vst.msk [vmem:[%s137] sm:$0xff] %vm556, %v510
        %558 = vst.msk [vmem:[%s137 + $0x8] sm:$0xff] %vm556, %v525
        %559 = vst.msk [vmem:[%s137 + $0x10] sm:$0xff] %vm556, %v540
        %560 = vst.msk [vmem:[%s137 + $0x18] sm:$0xff] %vm556, %v555
        %vm561 = vcmp.eq.s32.totalorder %v195, %v510
        %vm562 = vcmp.eq.s32.totalorder %v195, %v525
        %vm563 = vcmp.eq.s32.totalorder %v195, %v540
        %vm564 = vcmp.eq.s32.totalorder %v195, %v555
        %v565 = vsel %vm561, -inf, %v472
        %v566 = vsel %vm562, -inf, %v473
        %v567 = vsel %vm563, -inf, %v474
        %v568 = vsel %vm564, -inf, %v475
        %v569 = vsel %vm196, %v565, -inf
        %570 = vmax.xlane.f32.xlu0 %v569
        %v571 = vpop.xlane.xlu0 %570
        %v572 = vsel %vm196, %v566, -inf
        %573 = vmax.xlane.f32.xlu0 %v572
        %v574 = vpop.xlane.xlu0 %573
        %v575 = vsel %vm196, %v567, -inf
        %576 = vmax.xlane.f32.xlu0 %v575
        %v577 = vpop.xlane.xlu0 %576
        %v578 = vsel %vm196, %v568, -inf
        %579 = vmax.xlane.f32.xlu0 %v578
        %v580 = vpop.xlane.xlu0 %579
        %vm581 = vcmp.eq.f32.partialorder %v565, %v571
        %vm582 = vcmp.eq.f32.partialorder %v566, %v574
        %vm583 = vcmp.eq.f32.partialorder %v567, %v577
        %vm584 = vcmp.eq.f32.partialorder %v568, %v580
        %v585 = vsel %vm581, %v195, 64
        %v586 = vsel %vm582, %v195, 64
        %v587 = vsel %vm583, %v195, 64
        %v588 = vsel %vm584, %v195, 64
        %v589 = vsel %vm196, %v585, 2147483647
        %v590 = vand.u32 %v589, 65535
        %v591 = vshra.s32 %v589, 16
        %v592 = vcvt.s32.f32 %v590
        %v593 = vcvt.s32.f32 %v591
        %594 = vmin.xlane.f32.xlu0 %v593
        %v595 = vpop.xlane.xlu0 %594
        %vm596 = vcmp.eq.f32.partialorder %v593, %v595
        %v597 = vsel %vm596, %v592, inf
        %598 = vmin.xlane.f32.xlu0 %v597
        %v599 = vpop.xlane.xlu0 %598
        %v600 = vcvt.f32.s32 %v599
        %v601 = vcvt.f32.s32 %v595
        %v602 = vshll.u32 %v601, 16
        %v603 = vadd.s32 %v602, %v600
        %v604 = vsel %vm196, %v586, 2147483647
        %v605 = vand.u32 %v604, 65535
        %v606 = vshra.s32 %v604, 16
        %v607 = vcvt.s32.f32 %v605
        %v608 = vcvt.s32.f32 %v606
        %609 = vmin.xlane.f32.xlu0 %v608
        %v610 = vpop.xlane.xlu0 %609
        %vm611 = vcmp.eq.f32.partialorder %v608, %v610
        %v612 = vsel %vm611, %v607, inf
        %613 = vmin.xlane.f32.xlu0 %v612
        %v614 = vpop.xlane.xlu0 %613
        %v615 = vcvt.f32.s32 %v614
        %v616 = vcvt.f32.s32 %v610
        %v617 = vshll.u32 %v616, 16
        %v618 = vadd.s32 %v617, %v615
        %v619 = vsel %vm196, %v587, 2147483647
        %v620 = vand.u32 %v619, 65535
        %v621 = vshra.s32 %v619, 16
        %v622 = vcvt.s32.f32 %v620
        %v623 = vcvt.s32.f32 %v621
        %624 = vmin.xlane.f32.xlu0 %v623
        %v625 = vpop.xlane.xlu0 %624
        %vm626 = vcmp.eq.f32.partialorder %v623, %v625
        %v627 = vsel %vm626, %v622, inf
        %628 = vmin.xlane.f32.xlu0 %v627
        %v629 = vpop.xlane.xlu0 %628
        %v630 = vcvt.f32.s32 %v629
        %v631 = vcvt.f32.s32 %v625
        %v632 = vshll.u32 %v631, 16
        %v633 = vadd.s32 %v632, %v630
        %v634 = vsel %vm196, %v588, 2147483647
        %v635 = vand.u32 %v634, 65535
        %v636 = vshra.s32 %v634, 16
        %v637 = vcvt.s32.f32 %v635
        %v638 = vcvt.s32.f32 %v636
        %639 = vmin.xlane.f32.xlu0 %v638
        %v640 = vpop.xlane.xlu0 %639
        %vm641 = vcmp.eq.f32.partialorder %v638, %v640
        %v642 = vsel %vm641, %v637, inf
        %643 = vmin.xlane.f32.xlu0 %v642
        %v644 = vpop.xlane.xlu0 %643
        %v645 = vcvt.f32.s32 %v644
        %v646 = vcvt.f32.s32 %v640
        %v647 = vshll.u32 %v646, 16
        %v648 = vadd.s32 %v647, %v645
        %vm649 = vcmask 39968
        %650 = vst.msk [vmem:[%s137] sm:$0xff] %vm649, %v603
        %651 = vst.msk [vmem:[%s137 + $0x8] sm:$0xff] %vm649, %v618
        %652 = vst.msk [vmem:[%s137 + $0x10] sm:$0xff] %vm649, %v633
        %653 = vst.msk [vmem:[%s137 + $0x18] sm:$0xff] %vm649, %v648
        %vm654 = vcmp.eq.s32.totalorder %v195, %v603
        %vm655 = vcmp.eq.s32.totalorder %v195, %v618
        %vm656 = vcmp.eq.s32.totalorder %v195, %v633
        %vm657 = vcmp.eq.s32.totalorder %v195, %v648
        %v658 = vsel %vm654, -inf, %v565
        %v659 = vsel %vm655, -inf, %v566
        %v660 = vsel %vm656, -inf, %v567
        %v661 = vsel %vm657, -inf, %v568
        %v662 = vsel %vm196, %v658, -inf
        %663 = vmax.xlane.f32.xlu0 %v662
        %v664 = vpop.xlane.xlu0 %663
        %v665 = vsel %vm196, %v659, -inf
        %666 = vmax.xlane.f32.xlu0 %v665
        %v667 = vpop.xlane.xlu0 %666
        %v668 = vsel %vm196, %v660, -inf
        %669 = vmax.xlane.f32.xlu0 %v668
        %v670 = vpop.xlane.xlu0 %669
        %v671 = vsel %vm196, %v661, -inf
        %672 = vmax.xlane.f32.xlu0 %v671
        %v673 = vpop.xlane.xlu0 %672
        %vm674 = vcmp.eq.f32.partialorder %v658, %v664
        %vm675 = vcmp.eq.f32.partialorder %v659, %v667
        %vm676 = vcmp.eq.f32.partialorder %v660, %v670
        %vm677 = vcmp.eq.f32.partialorder %v661, %v673
        %v678 = vsel %vm674, %v195, 64
        %v679 = vsel %vm675, %v195, 64
        %v680 = vsel %vm676, %v195, 64
        %v681 = vsel %vm677, %v195, 64
        %v682 = vsel %vm196, %v678, 2147483647
        %v683 = vand.u32 %v682, 65535
        %v684 = vshra.s32 %v682, 16
        %v685 = vcvt.s32.f32 %v683
        %v686 = vcvt.s32.f32 %v684
        %687 = vmin.xlane.f32.xlu0 %v686
        %v688 = vpop.xlane.xlu0 %687
        %vm689 = vcmp.eq.f32.partialorder %v686, %v688
        %v690 = vsel %vm689, %v685, inf
        %691 = vmin.xlane.f32.xlu0 %v690
        %v692 = vpop.xlane.xlu0 %691
        %v693 = vcvt.f32.s32 %v692
        %v694 = vcvt.f32.s32 %v688
        %v695 = vshll.u32 %v694, 16
        %v696 = vadd.s32 %v695, %v693
        %v697 = vsel %vm196, %v679, 2147483647
        %v698 = vand.u32 %v697, 65535
        %v699 = vshra.s32 %v697, 16
        %v700 = vcvt.s32.f32 %v698
        %v701 = vcvt.s32.f32 %v699
        %702 = vmin.xlane.f32.xlu0 %v701
        %v703 = vpop.xlane.xlu0 %702
        %vm704 = vcmp.eq.f32.partialorder %v701, %v703
        %v705 = vsel %vm704, %v700, inf
        %706 = vmin.xlane.f32.xlu0 %v705
        %v707 = vpop.xlane.xlu0 %706
        %v708 = vcvt.f32.s32 %v707
        %v709 = vcvt.f32.s32 %v703
        %v710 = vshll.u32 %v709, 16
        %v711 = vadd.s32 %v710, %v708
        %v712 = vsel %vm196, %v680, 2147483647
        %v713 = vand.u32 %v712, 65535
        %v714 = vshra.s32 %v712, 16
        %v715 = vcvt.s32.f32 %v713
        %v716 = vcvt.s32.f32 %v714
        %717 = vmin.xlane.f32.xlu0 %v716
        %v718 = vpop.xlane.xlu0 %717
        %vm719 = vcmp.eq.f32.partialorder %v716, %v718
        %v720 = vsel %vm719, %v715, inf
        %721 = vmin.xlane.f32.xlu0 %v720
        %v722 = vpop.xlane.xlu0 %721
        %v723 = vcvt.f32.s32 %v722
        %v724 = vcvt.f32.s32 %v718
        %v725 = vshll.u32 %v724, 16
        %v726 = vadd.s32 %v725, %v723
        %v727 = vsel %vm196, %v681, 2147483647
        %v728 = vand.u32 %v727, 65535
        %v729 = vshra.s32 %v727, 16
        %v730 = vcvt.s32.f32 %v728
        %v731 = vcvt.s32.f32 %v729
        %732 = vmin.xlane.f32.xlu0 %v731
        %v733 = vpop.xlane.xlu0 %732
        %vm734 = vcmp.eq.f32.partialorder %v731, %v733
        %v735 = vsel %vm734, %v730, inf
        %736 = vmin.xlane.f32.xlu0 %v735
        %v737 = vpop.xlane.xlu0 %736
        %v738 = vcvt.f32.s32 %v737
        %v739 = vcvt.f32.s32 %v733
        %v740 = vshll.u32 %v739, 16
        %v741 = vadd.s32 %v740, %v738
        %vm742 = vcmask 48168
        %743 = vst.msk [vmem:[%s137] sm:$0xff] %vm742, %v696
        %744 = vst.msk [vmem:[%s137 + $0x8] sm:$0xff] %vm742, %v711
        %745 = vst.msk [vmem:[%s137 + $0x10] sm:$0xff] %vm742, %v726
        %746 = vst.msk [vmem:[%s137 + $0x18] sm:$0xff] %vm742, %v741
        %vm747 = vcmp.eq.s32.totalorder %v195, %v696
        %vm748 = vcmp.eq.s32.totalorder %v195, %v711
        %vm749 = vcmp.eq.s32.totalorder %v195, %v726
        %vm750 = vcmp.eq.s32.totalorder %v195, %v741
        %v751 = vsel %vm747, -inf, %v658
        %v752 = vsel %vm748, -inf, %v659
        %v753 = vsel %vm749, -inf, %v660
        %v754 = vsel %vm750, -inf, %v661
        %v755 = vsel %vm196, %v751, -inf
        %756 = vmax.xlane.f32.xlu0 %v755
        %v757 = vpop.xlane.xlu0 %756
        %v758 = vsel %vm196, %v752, -inf
        %759 = vmax.xlane.f32.xlu0 %v758
        %v760 = vpop.xlane.xlu0 %759
        %v761 = vsel %vm196, %v753, -inf
        %762 = vmax.xlane.f32.xlu0 %v761
        %v763 = vpop.xlane.xlu0 %762
        %v764 = vsel %vm196, %v754, -inf
        %765 = vmax.xlane.f32.xlu0 %v764
        %v766 = vpop.xlane.xlu0 %765
        %vm767 = vcmp.eq.f32.partialorder %v751, %v757
        %vm768 = vcmp.eq.f32.partialorder %v752, %v760
        %vm769 = vcmp.eq.f32.partialorder %v753, %v763
        %vm770 = vcmp.eq.f32.partialorder %v754, %v766
        %v771 = vsel %vm767, %v195, 64
        %v772 = vsel %vm768, %v195, 64
        %v773 = vsel %vm769, %v195, 64
        %v774 = vsel %vm770, %v195, 64
        %v775 = vsel %vm196, %v771, 2147483647
        %v776 = vand.u32 %v775, 65535
        %v777 = vshra.s32 %v775, 16
        %v778 = vcvt.s32.f32 %v776
        %v779 = vcvt.s32.f32 %v777
        %780 = vmin.xlane.f32.xlu0 %v779
        %v781 = vpop.xlane.xlu0 %780
        %vm782 = vcmp.eq.f32.partialorder %v779, %v781
        %v783 = vsel %vm782, %v778, inf
        %784 = vmin.xlane.f32.xlu0 %v783
        %v785 = vpop.xlane.xlu0 %784
        %v786 = vcvt.f32.s32 %v785
        %v787 = vcvt.f32.s32 %v781
        %v788 = vshll.u32 %v787, 16
        %v789 = vadd.s32 %v788, %v786
        %v790 = vsel %vm196, %v772, 2147483647
        %v791 = vand.u32 %v790, 65535
        %v792 = vshra.s32 %v790, 16
        %v793 = vcvt.s32.f32 %v791
        %v794 = vcvt.s32.f32 %v792
        %795 = vmin.xlane.f32.xlu0 %v794
        %v796 = vpop.xlane.xlu0 %795
        %vm797 = vcmp.eq.f32.partialorder %v794, %v796
        %v798 = vsel %vm797, %v793, inf
        %799 = vmin.xlane.f32.xlu0 %v798
        %v800 = vpop.xlane.xlu0 %799
        %v801 = vcvt.f32.s32 %v800
        %v802 = vcvt.f32.s32 %v796
        %v803 = vshll.u32 %v802, 16
        %v804 = vadd.s32 %v803, %v801
        %v805 = vsel %vm196, %v773, 2147483647
        %v806 = vand.u32 %v805, 65535
        %v807 = vshra.s32 %v805, 16
        %v808 = vcvt.s32.f32 %v806
        %v809 = vcvt.s32.f32 %v807
        %810 = vmin.xlane.f32.xlu0 %v809
        %v811 = vpop.xlane.xlu0 %810
        %vm812 = vcmp.eq.f32.partialorder %v809, %v811
        %v813 = vsel %vm812, %v808, inf
        %814 = vmin.xlane.f32.xlu0 %v813
        %v815 = vpop.xlane.xlu0 %814
        %v816 = vcvt.f32.s32 %v815
        %v817 = vcvt.f32.s32 %v811
        %v818 = vshll.u32 %v817, 16
        %v819 = vadd.s32 %v818, %v816
        %v820 = vsel %vm196, %v774, 2147483647
        %v821 = vand.u32 %v820, 65535
        %v822 = vshra.s32 %v820, 16
        %v823 = vcvt.s32.f32 %v821
        %v824 = vcvt.s32.f32 %v822
        %825 = vmin.xlane.f32.xlu0 %v824
        %v826 = vpop.xlane.xlu0 %825
        %vm827 = vcmp.eq.f32.partialorder %v824, %v826
        %v828 = vsel %vm827, %v823, inf
        %829 = vmin.xlane.f32.xlu0 %v828
        %v830 = vpop.xlane.xlu0 %829
        %v831 = vcvt.f32.s32 %v830
        %v832 = vcvt.f32.s32 %v826
        %v833 = vshll.u32 %v832, 16
        %v834 = vadd.s32 %v833, %v831
        %vm835 = vcmask 56368
        %836 = vst.msk [vmem:[%s137] sm:$0xff] %vm835, %v789
        %837 = vst.msk [vmem:[%s137 + $0x8] sm:$0xff] %vm835, %v804
        %838 = vst.msk [vmem:[%s137 + $0x10] sm:$0xff] %vm835, %v819
        %839 = vst.msk [vmem:[%s137 + $0x18] sm:$0xff] %vm835, %v834
        %vm840 = vcmp.eq.s32.totalorder %v195, %v789
        %vm841 = vcmp.eq.s32.totalorder %v195, %v804
        %vm842 = vcmp.eq.s32.totalorder %v195, %v819
        %vm843 = vcmp.eq.s32.totalorder %v195, %v834
        %v844 = vsel %vm840, -inf, %v751
        %v845 = vsel %vm841, -inf, %v752
        %v846 = vsel %vm842, -inf, %v753
        %v847 = vsel %vm843, -inf, %v754
        %v848 = vsel %vm196, %v844, -inf
        %849 = vmax.xlane.f32.xlu0 %v848
        %v850 = vpop.xlane.xlu0 %849
        %v851 = vsel %vm196, %v845, -inf
        %852 = vmax.xlane.f32.xlu0 %v851
        %v853 = vpop.xlane.xlu0 %852
        %v854 = vsel %vm196, %v846, -inf
        %855 = vmax.xlane.f32.xlu0 %v854
        %v856 = vpop.xlane.xlu0 %855
        %v857 = vsel %vm196, %v847, -inf
        %858 = vmax.xlane.f32.xlu0 %v857
        %v859 = vpop.xlane.xlu0 %858
        %vm860 = vcmp.eq.f32.partialorder %v844, %v850
        %vm861 = vcmp.eq.f32.partialorder %v845, %v853
        %vm862 = vcmp.eq.f32.partialorder %v846, %v856
        %vm863 = vcmp.eq.f32.partialorder %v847, %v859
        %v864 = vsel %vm860, %v195, 64
        %v865 = vsel %vm861, %v195, 64
        %v866 = vsel %vm862, %v195, 64
        %v867 = vsel %vm863, %v195, 64
        %v868 = vsel %vm196, %v864, 2147483647
        %v869 = vand.u32 %v868, 65535
        %v870 = vshra.s32 %v868, 16
        %v871 = vcvt.s32.f32 %v869
        %v872 = vcvt.s32.f32 %v870
        %873 = vmin.xlane.f32.xlu0 %v872
        %v874 = vpop.xlane.xlu0 %873
        %vm875 = vcmp.eq.f32.partialorder %v872, %v874
        %v876 = vsel %vm875, %v871, inf
        %877 = vmin.xlane.f32.xlu0 %v876
        %v878 = vpop.xlane.xlu0 %877
        %v879 = vcvt.f32.s32 %v878
        %v880 = vcvt.f32.s32 %v874
        %v881 = vshll.u32 %v880, 16
        %v882 = vadd.s32 %v881, %v879
        %v883 = vsel %vm196, %v865, 2147483647
        %v884 = vand.u32 %v883, 65535
        %v885 = vshra.s32 %v883, 16
        %v886 = vcvt.s32.f32 %v884
        %v887 = vcvt.s32.f32 %v885
        %888 = vmin.xlane.f32.xlu0 %v887
        %v889 = vpop.xlane.xlu0 %888
        %vm890 = vcmp.eq.f32.partialorder %v887, %v889
        %v891 = vsel %vm890, %v886, inf
        %892 = vmin.xlane.f32.xlu0 %v891
        %v893 = vpop.xlane.xlu0 %892
        %v894 = vcvt.f32.s32 %v893
        %v895 = vcvt.f32.s32 %v889
        %v896 = vshll.u32 %v895, 16
        %v897 = vadd.s32 %v896, %v894
        %v898 = vsel %vm196, %v866, 2147483647
        %v899 = vand.u32 %v898, 65535
        %v900 = vshra.s32 %v898, 16
        %v901 = vcvt.s32.f32 %v899
        %v902 = vcvt.s32.f32 %v900
        %903 = vmin.xlane.f32.xlu0 %v902
        %v904 = vpop.xlane.xlu0 %903
        %vm905 = vcmp.eq.f32.partialorder %v902, %v904
        %v906 = vsel %vm905, %v901, inf
        %907 = vmin.xlane.f32.xlu0 %v906
        %v908 = vpop.xlane.xlu0 %907
        %v909 = vcvt.f32.s32 %v908
        %v910 = vcvt.f32.s32 %v904
        %v911 = vshll.u32 %v910, 16
        %v912 = vadd.s32 %v911, %v909
        %v913 = vsel %vm196, %v867, 2147483647
        %v914 = vand.u32 %v913, 65535
        %v915 = vshra.s32 %v913, 16
        %v916 = vcvt.s32.f32 %v914
        %v917 = vcvt.s32.f32 %v915
        %918 = vmin.xlane.f32.xlu0 %v917
        %v919 = vpop.xlane.xlu0 %918
        %vm920 = vcmp.eq.f32.partialorder %v917, %v919
        %v921 = vsel %vm920, %v916, inf
        %922 = vmin.xlane.f32.xlu0 %v921
        %v923 = vpop.xlane.xlu0 %922
        %v924 = vcvt.f32.s32 %v923
        %v925 = vcvt.f32.s32 %v919
        %v926 = vshll.u32 %v925, 16
        %v927 = vadd.s32 %v926, %v924
        %vm928 = vcmask 64568
        %929 = vst.msk [vmem:[%s137] sm:$0xff] %vm928, %v882
        %930 = vst.msk [vmem:[%s137 + $0x8] sm:$0xff] %vm928, %v897
        %931 = vst.msk [vmem:[%s137 + $0x10] sm:$0xff] %vm928, %v912
        %932 = vst.msk [vmem:[%s137 + $0x18] sm:$0xff] %vm928, %v927
        %s933 = sand.u32 %s71, 1
        %s934 = scalar_lea.sflag [#allocation3], %s933
        %s935 = sand.u32 %s71, 1
        %s936 = smul.addr %s935, 32
        %s937 = scalar_lea.vmem [#allocation2], %s936
        // Predicated region
        $region29: #{tpu_custom_call.1} parent=27 // pred_check
          %p938 = pneg %p81
        $region30: #{tpu_custom_call.1} parent=27 // pred_check_branch
          %940 = sbr.rel (%p938) target = $region32
        $region31: #{tpu_custom_call.1} parent=27 // pred_region
          %s941 = smul.u32 4, %s16
          %943 = vsyncadd %s934, 0
          %s944 = smul.addr %s941, 8
          %s945 = scalar_lea.hbm %s2, %s944
          %s946 = sshll.u32 %s937, 4
          %s947 = int_to_ptr.vmem [resolvable:$true] %s946
          %s948 = sshll.u32 %s945, 4
          %s949 = int_to_ptr.hbm [resolvable:$true] %s948
          %954 = dma.vmem_to_hbm [thread:$0]  %s947, 512, %s949, %s934, 128, 128, 8
        $region32: #{tpu_custom_call.1} parent=27 // pred_fallthru
          _
      $region28: #{tpu_custom_call.1} parent=5 // pred_fallthru
        _
      %p955 = scmp.le.s32.totalorder 2, %s11
      // Predicated region
      $region33: #{tpu_custom_call.1} parent=5 // pred_check
        %p956 = pneg %p955
      $region34: #{tpu_custom_call.1} parent=5 // pred_check_branch
        %958 = sbr.rel (%p956) target = $region36
      $region35: #{tpu_custom_call.1} parent=5 // pred_region
        %s959 = ssub.s32 %s11, 2
        // Predicated region
        $region37: #{tpu_custom_call.1} parent=35 // pred_check
          %p960 = pneg %p87
        $region38: #{tpu_custom_call.1} parent=35 // pred_check_branch
          %962 = sbr.rel (%p960) target = $region40
        $region39: #{tpu_custom_call.1} parent=35 // pred_region
          %s963 = sand.u32 %s72, 1
          %s964 = scalar_lea.sflag [#allocation3], %s963
          %s965 = sand.u32 %s72, 1
          %s966 = smul.addr %s965, 32
          %s967 = scalar_lea.vmem [#allocation2], %s966
          %969 = dma.done %s964, 512
        $region40: #{tpu_custom_call.1} parent=35 // pred_fallthru
          _
      $region36: #{tpu_custom_call.1} parent=5 // pred_fallthru
        _
    $region6: #{tpu_custom_call.1} parent=1 // loop_footer
      %s15 = sadd.s32 1, %s11
    $region7: #{tpu_custom_call.1} parent=1 // loop_footer_branch
      %10 = sbr.rel target = $region3
    $region8: #{tpu_custom_call.1} parent=1 // loop_exit
      _
    %970 = vsyncpa [#allocation3], 1
    %s971 = scalar_lea.sflag [#allocation3], 1
    %972 = vsyncpa %s971, 1

</llo_original>
